<compile_context>
chip_gen: v5e
topology: v5e:2x2
jax: 0.10.0
libtpu: 0.0.40
codegen_flags: <defaults>
</compile_context>

<pallas_src>
import functools

import jax
import jax.numpy as jnp
from jax.experimental import pallas as pl
from jax.experimental.pallas import tpu as pltpu


def _ddfm_kernel(p_ref, i_ref, d_ref, bn1_ref, w_ref, bias_ref, o_ref, *,
                 approx_gate):
    """Fused DDFMv2 forward for one (batch-block, spatial-tile) step.

    Block shapes:
      p/i : (NB, Cin, T)    activations (stored dtype)
      d   : (NB, Cd,  T)    edge logits, Cd in {1, Cin}
      bn1 : (2, 2*Cin, 1)   folded BN1 [scale; bias] for [plain|image] branches (f32)
      w   : (Cout, 2*Cin)   BN2-folded, branch-concatenated 1x1 conv weights
      bias: (Cout, 1)       b2_p + b2_i (f32)
      o   : (NB, Cout, T)   output
    """
    nb = p_ref.shape[0]

    p = p_ref[...].astype(jnp.float32)
    it = i_ref[...].astype(jnp.float32)
    d = d_ref[...].astype(jnp.float32)

    # sigmoid gate: exp and (approx) reciprocal both land on the EUP slot.
    edge = pl.reciprocal(1.0 + jnp.exp(-d), approx=approx_gate)   # (NB, Cd, T)

    x_p = (1.0 - edge) * it + p          # plain branch input
    x_i = it + edge * p                  # image branch input

    # Stack both branches along channels -> one BN1+ReLU pass, one matmul.
    x = jnp.concatenate([x_p, x_i], axis=1)          # (NB, 2*Cin, T)
    s1 = bn1_ref[0]                                  # (2*Cin, 1)
    b1 = bn1_ref[1]                                  # (2*Cin, 1)
    w = w_ref[...]                                   # (Cout, 2*Cin)
    y = jnp.maximum(x * s1 + b1, 0.0).astype(w.dtype)

    bias = bias_ref[...]                             # (Cout, 1), f32
    for b in range(nb):                              # static unroll: one MXU dot / image
        z = jnp.dot(w, y[b], preferred_element_type=jnp.float32)   # (Cout, T)
        o_ref[b] = (z + bias).astype(o_ref.dtype)


def _fold_bn(gamma, beta, mean, var, eps):
    scale = gamma.astype(jnp.float32) / jnp.sqrt(var.astype(jnp.float32) + eps)
    bias = beta.astype(jnp.float32) - mean.astype(jnp.float32) * scale
    return scale, bias


def _vmem_budget():
    """Generation-aware VMEM working-set budget and scoped limit."""
    cap = 64 * 1024 * 1024                      # conservative default (v7x per-TC)
    try:
        cap = int(getattr(pltpu.get_tpu_info(), "vmem_capacity_bytes", cap))
    except Exception:
        pass
    budget = int(cap * 0.45)                    # double-buffered working-set target
    limit = min(int(cap * 0.85), cap - (2 << 20))
    return budget, limit


def _pick_tiles(n, hw, cin, cd, cout, act_bytes, out_bytes, budget_bytes):
    """Largest lane-aligned spatial tile T and batch block NB that fit VMEM."""
    # Per (batch element, lane column): pipelined IO is double-buffered by the
    # BlockSpec machinery; in-kernel intermediates (edge/x/y/z) are resident once.
    io_col = (2 * cin + cd) * act_bytes + cout * out_bytes
    mid_col = (cd + 6 * cin + cout) * 4 + 2 * cin * act_bytes
    col = 2 * io_col + mid_col

    cands = sorted({hw} | {t for t in (8192, 4096, 2048, 1024, 512, 256, 128)
                           if t <= hw and hw % t == 0}, reverse=True)
    T = cands[-1]                               # smallest legal tile as a last resort
    for t in cands:                             # largest-first; t == hw is allowed
        if t * col <= budget_bytes:
            T = t
            break

    NB = 1                                      # group images so each grid step moves enough bytes
    for nb in range(min(n, 8), 0, -1):
        if n % nb == 0 and nb * T * col <= budget_bytes:
            NB = nb
            break
    return NB, T


def ddfmv2_forward(p, i, d, params, *, compute_dtype=jnp.float32,
                   out_dtype=None, eps=1e-5, approx_gate=None):
    """Pallas implementation of DDFMv2.forward (eval-mode BatchNorm)."""
    N, Cin, H, W = p.shape
    Cd = d.shape[1]
    assert Cd in (1, Cin), "edge map must have 1 or Cin channels"
    Cout = params["w_p"].shape[0]
    HW = H * W

    if out_dtype is None:
        out_dtype = compute_dtype
    if approx_gate is None:
        approx_gate = (jnp.dtype(compute_dtype) == jnp.dtype(jnp.bfloat16))

    # NCHW -> (N, C, H*W): spatial becomes the lane axis. Pure reshape,
    # no transpose and no dtype-conversion pass through HBM.
    p3 = p.reshape(N, Cin, HW)
    i3 = i.reshape(N, Cin, HW)
    d3 = d.reshape(N, Cd, HW)

    # Fold BN1 (pre-conv) into per-channel scale/bias, stacked for both branches.
    s1p, b1p = _fold_bn(params["g1p"], params["b1p"], params["m1p"], params["v1p"], eps)
    s1i, b1i = _fold_bn(params["g1i"], params["b1i"], params["m1i"], params["v1i"], eps)
    bn1 = jnp.stack([jnp.concatenate([s1p, s1i]),
                     jnp.concatenate([b1p, b1i])]).reshape(2, 2 * Cin, 1)

    # Fold BN2 (post-conv) into the conv weights + a single additive bias, and
    # concatenate both branches into one (Cout, 2*Cin) contraction.
    s2p, b2p = _fold_bn(params["g2p"], params["b2p"], params["m2p"], params["v2p"], eps)
    s2i, b2i = _fold_bn(params["g2i"], params["b2i"], params["m2i"], params["v2i"], eps)
    w_p = params["w_p"].reshape(Cout, Cin).astype(jnp.float32) * s2p[:, None]
    w_i = params["w_i"].reshape(Cout, Cin).astype(jnp.float32) * s2i[:, None]
    w = jnp.concatenate([w_p, w_i], axis=1).astype(compute_dtype)
    bias = (b2p + b2i).reshape(Cout, 1)

    act_bytes = jnp.dtype(p3.dtype).itemsize
    out_bytes = jnp.dtype(out_dtype).itemsize
    budget, vmem_limit = _vmem_budget()
    NB, T = _pick_tiles(N, HW, Cin, Cd, Cout, act_bytes, out_bytes, budget)
    grid = (N // NB, HW // T)

    act_spec = pl.BlockSpec((NB, Cin, T), lambda n, t: (n, 0, t))
    d_spec = pl.BlockSpec((NB, Cd, T), lambda n, t: (n, 0, t))
    bn1_spec = pl.BlockSpec((2, 2 * Cin, 1), lambda n, t: (0, 0, 0))
    w_spec = pl.BlockSpec((Cout, 2 * Cin), lambda n, t: (0, 0))
    bias_spec = pl.BlockSpec((Cout, 1), lambda n, t: (0, 0))
    out_spec = pl.BlockSpec((NB, Cout, T), lambda n, t: (n, 0, t))

    flops = (2 * N * HW * (2 * Cin) * Cout                       # fused 1x1 convs (MXU)
             + N * HW * (10 * Cin + 4 * Cd + 2 * Cout))          # pointwise
    bytes_accessed = (N * HW * ((2 * Cin + Cd) * act_bytes + Cout * out_bytes)
                      + int(w.size) * jnp.dtype(compute_dtype).itemsize
                      + int(bn1.size) * 4 + int(bias.size) * 4)

    out = pl.pallas_call(
        functools.partial(_ddfm_kernel, approx_gate=approx_gate),
        out_shape=jax.ShapeDtypeStruct((N, Cout, HW), out_dtype),
        grid=grid,
        in_specs=[act_spec, act_spec, d_spec, bn1_spec, w_spec, bias_spec],
        out_specs=out_spec,
        compiler_params=pltpu.CompilerParams(
            dimension_semantics=("parallel", "parallel"),
            vmem_limit_bytes=vmem_limit),
        cost_estimate=pl.CostEstimate(
            flops=flops,
            transcendentals=N * Cd * HW,
            bytes_accessed=bytes_accessed),
    )(p3, i3, d3, bn1, w, bias)

    return out.reshape(N, Cout, H, W)


def ddfmv2_reference(p, i, d, params, eps=1e-5):
    """Pure-JAX reference (lax.conv) for correctness checking."""
    edge = jax.nn.sigmoid(d)
    x_p = (1.0 - edge) * i + p
    x_i = i + edge * p

    def bn(x, g, b, m, v):
        s = g / jnp.sqrt(v + eps)
        return x * s[None, :, None, None] + (b - m * s)[None, :, None, None]

    def conv1x1(x, w):
        return jax.lax.conv_general_dilated(
            x, w, window_strides=(1, 1), padding="VALID",
            dimension_numbers=("NCHW", "OIHW", "NCHW"))

    def branch(x, sfx):
        y = jnp.maximum(bn(x, params["g1" + sfx], params["b1" + sfx],
                           params["m1" + sfx], params["v1" + sfx]), 0.0)
        z = conv1x1(y, params["w_" + sfx])
        return bn(z, params["g2" + sfx], params["b2" + sfx],
                  params["m2" + sfx], params["v2" + sfx])

    return branch(x_p, "p") + branch(x_i, "i")


if __name__ == "__main__":
    N, Cin, Cout, H, W = 2, 4, 8, 16, 16   # in_channels=4, out_channels=8

    key = jax.random.PRNGKey(0)
    ks = iter(jax.random.split(key, 32))

    def bn_params(c):
        return (1.0 + 0.1 * jax.random.normal(next(ks), (c,), jnp.float32),   # gamma
                0.1 * jax.random.normal(next(ks), (c,), jnp.float32),         # beta
                0.05 * jax.random.normal(next(ks), (c,), jnp.float32),        # running_mean
                0.5 + jax.random.uniform(next(ks), (c,), jnp.float32))        # running_var

    params = {}
    for sfx in ("p", "i"):
        (params["g1" + sfx], params["b1" + sfx],
         params["m1" + sfx], params["v1" + sfx]) = bn_params(Cin)
        params["w_" + sfx] = 0.3 * jax.random.normal(next(ks), (Cout, Cin, 1, 1),
                                                     jnp.float32)
        (params["g2" + sfx], params["b2" + sfx],
         params["m2" + sfx], params["v2" + sfx]) = bn_params(Cout)

    p = jax.random.normal(next(ks), (N, Cin, H, W), jnp.float32)
    i = jax.random.normal(next(ks), (N, Cin, H, W), jnp.float32)
    d_full = jax.random.normal(next(ks), (N, Cin, H, W), jnp.float32)   # per-channel d
    d_edge = jax.random.normal(next(ks), (N, 1, H, W), jnp.float32)     # 1-channel edge map

    # f32 compute path, d with Cin channels: must match the reference tightly.
    ref_full = jax.block_until_ready(ddfmv2_reference(p, i, d_full, params))
    out_full = jax.block_until_ready(
        ddfmv2_forward(p, i, d_full, params, compute_dtype=jnp.float32))
    assert out_full.shape == (N, Cout, H, W)
    assert jnp.allclose(out_full, ref_full, atol=1e-4, rtol=1e-4), "f32 (Cin-ch d) mismatch"

    # f32 compute path, 1-channel edge map (no broadcast materialized in HBM).
    ref_edge = jax.block_until_ready(ddfmv2_reference(p, i, d_edge, params))
    out_edge = jax.block_until_ready(
        ddfmv2_forward(p, i, d_edge, params, compute_dtype=jnp.float32))
    assert jnp.allclose(out_edge, ref_edge, atol=1e-4, rtol=1e-4), "f32 (1-ch d) mismatch"

    # bf16 weights/matmul + bf16 output (production path; f32 accumulation, looser tol).
    out_bf16 = jax.block_until_ready(
        ddfmv2_forward(p, i, d_edge, params, compute_dtype=jnp.bfloat16))
    assert out_bf16.dtype == jnp.bfloat16
    assert jnp.allclose(out_bf16.astype(jnp.float32), ref_edge,
                        atol=1e-1, rtol=1e-1), "bf16 mismatch vs reference"

    print("KERNEL_OK")
</pallas_src>

<mosaic_0001>
module attributes {stable_mosaic.version = 11 : i64} {
  func.func @_ddfm_kernel(%arg0: i32, %arg1: i32, %arg2: memref<2x4x256xf32, #tpu.memory_space<vmem>>, %arg3: memref<2x4x256xf32, #tpu.memory_space<vmem>>, %arg4: memref<2x4x256xf32, #tpu.memory_space<vmem>>, %arg5: memref<2x8x1xf32, #tpu.memory_space<vmem>>, %arg6: memref<8x8xf32, #tpu.memory_space<vmem>>, %arg7: memref<8x1xf32, #tpu.memory_space<vmem>>, %arg8: memref<2x8x256xf32, #tpu.memory_space<vmem>>) attributes {dimension_semantics = [#tpu.dimension_semantics<parallel>, #tpu.dimension_semantics<parallel>], iteration_bounds = array<i64: 1, 1>, scalar_prefetch = 0 : i64, scratch_operands = 0 : i64, tpu.core_type = #tpu.core_type<tc>, window_params = [{transform_indices = @transform_0, window_bounds = array<i64: 2, 4, 256>}, {transform_indices = @transform_1, window_bounds = array<i64: 2, 4, 256>}, {transform_indices = @transform_2, window_bounds = array<i64: 2, 4, 256>}, {pipeline_mode = #tpu.pipeline_mode<synchronous>, transform_indices = @transform_3, window_bounds = array<i64: 2, 8, 1>}, {pipeline_mode = #tpu.pipeline_mode<synchronous>, transform_indices = @transform_4, window_bounds = array<i64: 8, 8>}, {pipeline_mode = #tpu.pipeline_mode<synchronous>, transform_indices = @transform_5, window_bounds = array<i64: 8, 1>}, {transform_indices = @transform_6, window_bounds = array<i64: 2, 8, 256>}]} {
    %c0 = arith.constant 0 : index
    %c0_0 = arith.constant 0 : index
    %c0_1 = arith.constant 0 : index
    %0 = vector.load %arg2[%c0, %c0_0, %c0_1] : memref<2x4x256xf32, #tpu.memory_space<vmem>>, vector<2x4x256xf32>
    %c0_2 = arith.constant 0 : index
    %c0_3 = arith.constant 0 : index
    %c0_4 = arith.constant 0 : index
    %1 = vector.load %arg3[%c0_2, %c0_3, %c0_4] : memref<2x4x256xf32, #tpu.memory_space<vmem>>, vector<2x4x256xf32>
    %c0_5 = arith.constant 0 : index
    %c0_6 = arith.constant 0 : index
    %c0_7 = arith.constant 0 : index
    %2 = vector.load %arg4[%c0_5, %c0_6, %c0_7] : memref<2x4x256xf32, #tpu.memory_space<vmem>>, vector<2x4x256xf32>
    %cst = arith.constant 0.000000e+00 : f32
    %3 = vector.broadcast %cst : f32 to vector<2x4x256xf32>
    %4 = arith.subf %3, %2 : vector<2x4x256xf32>
    %5 = math.exp %4 : vector<2x4x256xf32>
    %cst_8 = arith.constant 1.000000e+00 : f32
    %6 = vector.broadcast %cst_8 : f32 to vector<2x4x256xf32>
    %7 = arith.addf %6, %5 : vector<2x4x256xf32>
    %8 = tpu.reciprocal %7 : vector<2x4x256xf32> -> vector<2x4x256xf32>
    %cst_9 = arith.constant 1.000000e+00 : f32
    %9 = vector.broadcast %cst_9 : f32 to vector<2x4x256xf32>
    %10 = arith.subf %9, %8 : vector<2x4x256xf32>
    %11 = arith.mulf %10, %1 : vector<2x4x256xf32>
    %12 = arith.addf %11, %0 : vector<2x4x256xf32>
    %13 = arith.mulf %8, %0 : vector<2x4x256xf32>
    %14 = arith.addf %1, %13 : vector<2x4x256xf32>
    %15 = tpu.concatenate %12, %14 in 1 : vector<2x4x256xf32>, vector<2x4x256xf32> -> vector<2x8x256xf32>
    %c0_10 = arith.constant 0 : index
    %c0_11 = arith.constant 0 : index
    %c0_12 = arith.constant 0 : index
    %16 = vector.load %arg5[%c0_10, %c0_11, %c0_12] : memref<2x8x1xf32, #tpu.memory_space<vmem>>, vector<1x8x1xf32>
    %17 = vector.shape_cast %16 : vector<1x8x1xf32> to vector<8x1xf32>
    %c1 = arith.constant 1 : index
    %c0_13 = arith.constant 0 : index
    %c0_14 = arith.constant 0 : index
    %18 = vector.load %arg5[%c1, %c0_13, %c0_14] : memref<2x8x1xf32, #tpu.memory_space<vmem>>, vector<1x8x1xf32>
    %19 = vector.shape_cast %18 : vector<1x8x1xf32> to vector<8x1xf32>
    %c0_15 = arith.constant 0 : index
    %c0_16 = arith.constant 0 : index
    %20 = vector.load %arg6[%c0_15, %c0_16] : memref<8x8xf32, #tpu.memory_space<vmem>>, vector<8x8xf32>
    %21 = vector.shape_cast %17 : vector<8x1xf32> to vector<1x8x1xf32>
    %22 = vector.broadcast %21 : vector<1x8x1xf32> to vector<2x8x256xf32>
    %23 = arith.mulf %15, %22 : vector<2x8x256xf32>
    %24 = vector.shape_cast %19 : vector<8x1xf32> to vector<1x8x1xf32>
    %25 = vector.broadcast %24 : vector<1x8x1xf32> to vector<2x8x256xf32>
    %26 = arith.addf %23, %25 : vector<2x8x256xf32>
    %cst_17 = arith.constant 0.000000e+00 : f32
    %27 = vector.broadcast %cst_17 : f32 to vector<2x8x256xf32>
    %28 = arith.maximumf %26, %27 : vector<2x8x256xf32>
    %c0_18 = arith.constant 0 : index
    %c0_19 = arith.constant 0 : index
    %29 = vector.load %arg7[%c0_18, %c0_19] : memref<8x1xf32, #tpu.memory_space<vmem>>, vector<8x1xf32>
    %30 = vector.extract_strided_slice %28 {offsets = [0, 0, 0], sizes = [1, 8, 256], strides = [1, 1, 1]} : vector<2x8x256xf32> to vector<1x8x256xf32>
    %31 = vector.shape_cast %30 : vector<1x8x256xf32> to vector<8x256xf32>
    %cst_20 = arith.constant dense<0.000000e+00> : vector<8x256xf32>
    %32 = tpu.matmul %20, %31, %cst_20 {dimension_numbers = #tpu.dot_dimension_numbers<[1], [0], [0], [1], [0, 0, 1, 1], [], []>} : vector<8x8xf32>, vector<8x256xf32>, vector<8x256xf32> -> vector<8x256xf32>
    %33 = vector.broadcast %29 : vector<8x1xf32> to vector<8x256xf32>
    %34 = arith.addf %32, %33 : vector<8x256xf32>
    %c0_21 = arith.constant 0 : index
    %c0_22 = arith.constant 0 : index
    %c0_23 = arith.constant 0 : index
    %35 = vector.load %arg8[%c0_21, %c0_22, %c0_23] : memref<2x8x256xf32, #tpu.memory_space<vmem>>, vector<1x8x256xf32>
    %36 = vector.shape_cast %35 : vector<1x8x256xf32> to vector<8x256xf32>
    %37 = vector.shape_cast %34 : vector<8x256xf32> to vector<1x8x256xf32>
    tpu.vector_store %arg8[%c0_21, %c0_22, %c0_23], %37 {strides = array<i32>} : memref<2x8x256xf32, #tpu.memory_space<vmem>>, vector<1x8x256xf32>,
    %38 = vector.extract_strided_slice %28 {offsets = [1, 0, 0], sizes = [1, 8, 256], strides = [1, 1, 1]} : vector<2x8x256xf32> to vector<1x8x256xf32>
    %39 = vector.shape_cast %38 : vector<1x8x256xf32> to vector<8x256xf32>
    %cst_24 = arith.constant dense<0.000000e+00> : vector<8x256xf32>
    %40 = tpu.matmul %20, %39, %cst_24 {dimension_numbers = #tpu.dot_dimension_numbers<[1], [0], [0], [1], [0, 0, 1, 1], [], []>} : vector<8x8xf32>, vector<8x256xf32>, vector<8x256xf32> -> vector<8x256xf32>
    %41 = vector.broadcast %29 : vector<8x1xf32> to vector<8x256xf32>
    %42 = arith.addf %40, %41 : vector<8x256xf32>
    %c1_25 = arith.constant 1 : index
    %c0_26 = arith.constant 0 : index
    %c0_27 = arith.constant 0 : index
    %43 = vector.load %arg8[%c1_25, %c0_26, %c0_27] : memref<2x8x256xf32, #tpu.memory_space<vmem>>, vector<1x8x256xf32>
    %44 = vector.shape_cast %43 : vector<1x8x256xf32> to vector<8x256xf32>
    %45 = vector.shape_cast %42 : vector<8x256xf32> to vector<1x8x256xf32>
    tpu.vector_store %arg8[%c1_25, %c0_26, %c0_27], %45 {strides = array<i32>} : memref<2x8x256xf32, #tpu.memory_space<vmem>>, vector<1x8x256xf32>,
    return
  }
  func.func @transform_0(%arg0: i32, %arg1: i32) -> (i32, i32, i32) {
    %c0_i32 = arith.constant 0 : i32
    %c0_i32_0 = arith.constant 0 : i32
    return %arg0, %c0_i32, %arg1 : i32, i32, i32
  }
  func.func @transform_1(%arg0: i32, %arg1: i32) -> (i32, i32, i32) {
    %c0_i32 = arith.constant 0 : i32
    %c0_i32_0 = arith.constant 0 : i32
    return %arg0, %c0_i32, %arg1 : i32, i32, i32
  }
  func.func @transform_2(%arg0: i32, %arg1: i32) -> (i32, i32, i32) {
    %c0_i32 = arith.constant 0 : i32
    %c0_i32_0 = arith.constant 0 : i32
    return %arg0, %c0_i32, %arg1 : i32, i32, i32
  }
  func.func @transform_3(%arg0: i32, %arg1: i32) -> (i32, i32, i32) {
    %c0_i32 = arith.constant 0 : i32
    %c0_i32_0 = arith.constant 0 : i32
    %c0_i32_1 = arith.constant 0 : i32
    %c0_i32_2 = arith.constant 0 : i32
    return %c0_i32, %c0_i32_0, %c0_i32_1 : i32, i32, i32
  }
  func.func @transform_4(%arg0: i32, %arg1: i32) -> (i32, i32) {
    %c0_i32 = arith.constant 0 : i32
    %c0_i32_0 = arith.constant 0 : i32
    %c0_i32_1 = arith.constant 0 : i32
    return %c0_i32, %c0_i32_0 : i32, i32
  }
  func.func @transform_5(%arg0: i32, %arg1: i32) -> (i32, i32) {
    %c0_i32 = arith.constant 0 : i32
    %c0_i32_0 = arith.constant 0 : i32
    %c0_i32_1 = arith.constant 0 : i32
    return %c0_i32, %c0_i32_0 : i32, i32
  }
  func.func @transform_6(%arg0: i32, %arg1: i32) -> (i32, i32, i32) {
    %c0_i32 = arith.constant 0 : i32
    %c0_i32_0 = arith.constant 0 : i32
    return %arg0, %c0_i32, %arg1 : i32, i32, i32
  }
}

</mosaic_0001>

<llo_original>
// kernel: tpu_custom_call.1
$region0: #{tpu_custom_call.1}
  #allocation0 [shape = 'u32[]', space=smem, size = 0x4, offset = 0x4, fixed_abs, tag = 'smem constant byte address 0x4 - core index']
  #allocation1 [shape = 'u32[72,128]{1,0:T(1,128)}', space=vmem, size = 0x9000, scoped, tag = 'internal scratch']
  %s0 = inlined_call_operand.vmem [shape: f32[2,4,256], index: 0, kind: input, shape index: {}]
  %s1 = inlined_call_operand.hbm [shape: f32[2,4,256], index: 1, kind: input, shape index: {}]
  %s2 = inlined_call_operand.hbm [shape: f32[2,4,256], index: 2, kind: input, shape index: {}]
  %s3 = inlined_call_operand.vmem [shape: f32[2,8,1], index: 3, kind: input, shape index: {}]
  %s4 = inlined_call_operand.vmem [shape: f32[8,8], index: 4, kind: input, shape index: {}]
  %s5 = inlined_call_operand.vmem [shape: f32[8,1], index: 5, kind: input, shape index: {}]
  %s6 = inlined_call_operand.hbm [shape: f32[2,8,256], index: 6, kind: output, shape index: {}]
  %s7 = sld [smem:[#allocation0]]
  $region42: #{tpu_custom_call.1} parent=0
    _
  %s9 = ssub.s32 1, %s7
  %s10 = scalar_select 0, %s9, %s7
  $region1: #{tpu_custom_call.1} parent=0
    #allocation2 [shape = 'u8[8192]{0}', space=vmem, size = 0x2000, scoped, tag = 'input window, operand 1, single buffered']
    #allocation3 [shape = 's32[1]{0}', space=sflag, size = 0x4, scoped, tag = 'scoped memory for tpu_custom_call.1']
    #allocation4 [shape = 's32[1]{0}', space=sflag, size = 0x4, scoped, tag = 'scoped memory for tpu_custom_call.1']
    #allocation5 [shape = 'u8[8192]{0}', space=vmem, size = 0x2000, scoped, tag = 'input window, operand 2, single buffered']
    #allocation6 [shape = 's32[1]{0}', space=sflag, size = 0x4, scoped, tag = 'scoped memory for tpu_custom_call.1']
    #allocation7 [shape = 'u8[16384]{0}', space=vmem, size = 0x4000, scoped, tag = 'output window, operand 0, single buffered']
    %11 = vsyncpa [#allocation3], 0
    %12 = vsyncpa [#allocation6], 0
    %13 = vsyncpa [#allocation4], 0
    // Predicated region
    $region2: #{tpu_custom_call.1} parent=1 // pred_check
      _
    $region3: #{tpu_custom_call.1} parent=1 // pred_check_branch
      %15 = sbr.rel (0) target = $region5
    $region4: #{tpu_custom_call.1} parent=1 // pred_region
      _
    $region5: #{tpu_custom_call.1} parent=1 // pred_fallthru
      _
    // Predicated region
    $region6: #{tpu_custom_call.1} parent=1 // pred_check
      _
    $region7: #{tpu_custom_call.1} parent=1 // pred_check_branch
      %17 = sbr.rel (0) target = $region9
    $region8: #{tpu_custom_call.1} parent=1 // pred_region
      %19 = vsyncadd [#allocation3], 0
      %s20 = sshll.u32 %s1, 4
      %s21 = int_to_ptr.hbm [resolvable:$true] %s20
      %s22 = sshll.u32 [#allocation2], 4
      %s23 = int_to_ptr.vmem [resolvable:$true] %s22
      %28 = dma.hbm_to_vmem [thread:$0]  %s21, 256, %s23, [#allocation3], 128, 128, 8
    $region9: #{tpu_custom_call.1} parent=1 // pred_fallthru
      _
    // Predicated region
    $region10: #{tpu_custom_call.1} parent=1 // pred_check
      _
    $region11: #{tpu_custom_call.1} parent=1 // pred_check_branch
      %30 = sbr.rel (0) target = $region13
    $region12: #{tpu_custom_call.1} parent=1 // pred_region
      %32 = vsyncadd [#allocation6], 0
      %s33 = sshll.u32 %s2, 4
      %s34 = int_to_ptr.hbm [resolvable:$true] %s33
      %s35 = sshll.u32 [#allocation5], 4
      %s36 = int_to_ptr.vmem [resolvable:$true] %s35
      %41 = dma.hbm_to_vmem [thread:$0]  %s34, 256, %s36, [#allocation6], 128, 128, 8
    $region13: #{tpu_custom_call.1} parent=1 // pred_fallthru
      _
    // Predicated region
    $region14: #{tpu_custom_call.1} parent=1 // pred_check
      _
    $region15: #{tpu_custom_call.1} parent=1 // pred_check_branch
      %43 = sbr.rel (0) target = $region17
    $region16: #{tpu_custom_call.1} parent=1 // pred_region
      _
    $region17: #{tpu_custom_call.1} parent=1 // pred_fallthru
      _
    // Predicated region
    $region18: #{tpu_custom_call.1} parent=1 // pred_check
      _
    $region19: #{tpu_custom_call.1} parent=1 // pred_check_branch
      %45 = sbr.rel (0) target = $region21
    $region20: #{tpu_custom_call.1} parent=1 // pred_region
      _
    $region21: #{tpu_custom_call.1} parent=1 // pred_fallthru
      _
    // Predicated region
    $region22: #{tpu_custom_call.1} parent=1 // pred_check
      _
    $region23: #{tpu_custom_call.1} parent=1 // pred_check_branch
      %47 = sbr.rel (0) target = $region25
    $region24: #{tpu_custom_call.1} parent=1 // pred_region
      _
    $region25: #{tpu_custom_call.1} parent=1 // pred_fallthru
      _
    // Predicated region
    $region26: #{tpu_custom_call.1} parent=1 // pred_check
      _
    $region27: #{tpu_custom_call.1} parent=1 // pred_check_branch
      %49 = sbr.rel (0) target = $region29
    $region28: #{tpu_custom_call.1} parent=1 // pred_region
      %51 = dma.done [#allocation3], 256
    $region29: #{tpu_custom_call.1} parent=1 // pred_fallthru
      _
    // Predicated region
    $region30: #{tpu_custom_call.1} parent=1 // pred_check
      _
    $region31: #{tpu_custom_call.1} parent=1 // pred_check_branch
      %53 = sbr.rel (0) target = $region33
    $region32: #{tpu_custom_call.1} parent=1 // pred_region
      %55 = dma.done [#allocation6], 256
    $region33: #{tpu_custom_call.1} parent=1 // pred_fallthru
      _
    %v56 = vld [vmem:[%s0] sm:$0xff]
    %v57 = vld [vmem:[%s0 + $0x8] sm:$0xff]
    %v58 = vld [vmem:[#allocation2] sm:$0xff]
    %v59 = vld [vmem:[#allocation2 + $0x8] sm:$0xff]
    %v60 = vld [vmem:[#allocation5] sm:$0xff]
    %v61 = vld [vmem:[#allocation5 + $0x8] sm:$0xff]
    %v62 = vsub.f32 0.0, %v60
    %v63 = vsub.f32 0.0, %v61
    %v64 = vmul.f32 %v62, 1.442695
    %v65 = vpow.pop %v64
    %v66 = vmul.f32 %v63, 1.442695
    %v67 = vpow.pop %v66
    %v68 = vadd.f32 %v65, 1.0
    %v69 = vadd.f32 %v67, 1.0
    %v70 = vrcp.pop %v68
    %v71 = vmul.f32 %v68, %v70
    %v72 = vsub.f32 1.0, %v71
    %v73 = vmul.f32 %v70, %v72
    %v74 = vadd.f32 %v70, %v73
    %vm75 = vweird.f32 %v68
    %vm76 = vweird.f32 %v70
    %vm77 = vmor %vm75, %vm76
    %v78 = vsel %vm77, %v70, %v74
    %v79 = vand.u32 2147483647, %v68
    %vm80 = vcmp.eq.f32.partialorder %v79, 8.507059e+37
    %v81 = vand.u32 %v68, 2147483648
    %v82 = vor.u32 1.1754944e-38, %v81
    %v83 = vsel %vm80, %v82, %v78
    %v84 = vrcp.pop %v69
    %v85 = vmul.f32 %v69, %v84
    %v86 = vsub.f32 1.0, %v85
    %v87 = vmul.f32 %v84, %v86
    %v88 = vadd.f32 %v84, %v87
    %vm89 = vweird.f32 %v69
    %vm90 = vweird.f32 %v84
    %vm91 = vmor %vm89, %vm90
    %v92 = vsel %vm91, %v84, %v88
    %v93 = vand.u32 2147483647, %v69
    %vm94 = vcmp.eq.f32.partialorder %v93, 8.507059e+37
    %v95 = vand.u32 %v69, 2147483648
    %v96 = vor.u32 1.1754944e-38, %v95
    %v97 = vsel %vm94, %v96, %v92
    %v98 = vsub.f32 1.0, %v83
    %v99 = vsub.f32 1.0, %v97
    %v100 = vmul.f32 %v98, %v58
    %v101 = vmul.f32 %v99, %v59
    %v102 = vadd.f32 %v100, %v56
    %v103 = vadd.f32 %v101, %v57
    %v104 = vmul.f32 %v83, %v56
    %v105 = vmul.f32 %v97, %v57
    %v106 = vadd.f32 %v58, %v104
    %v107 = vadd.f32 %v59, %v105
    %110 = vst [vmem:[#allocation1] ss:$2 sm:$0xff] %v102
    %v111 = vld.sshfl [vmem:[#allocation1] sm:$0xff pattern:$0x75316420]
    %v112 = vld.sshfl [vmem:[#allocation1 + $0x8] sm:$0xff pattern:$0x75316420]
    %s113 = scalar_lea.vmem [#allocation1], 16
    %114 = vst [vmem:[%s113] ss:$2 sm:$0xff] %v103
    %v115 = vld.sshfl [vmem:[#allocation1 + $0x10] sm:$0xff pattern:$0x75316420]
    %v116 = vld.sshfl [vmem:[#allocation1 + $0x18] sm:$0xff pattern:$0x75316420]
    %s123 = scalar_lea.vmem [#allocation1], 1
    %124 = vst [vmem:[%s123] ss:$2 sm:$0xff] %v106
    %v125 = vld.sshfl [vmem:[#allocation1] sm:$0xff pattern:$0x75316420]
    %v126 = vld.sshfl [vmem:[#allocation1 + $0x8] sm:$0xff pattern:$0x75316420]
    %s127 = scalar_lea.vmem [#allocation1], 17
    %128 = vst [vmem:[%s127] ss:$2 sm:$0xff] %v107
    %v129 = vld.sshfl [vmem:[#allocation1 + $0x10] sm:$0xff pattern:$0x75316420]
    %v130 = vld.sshfl [vmem:[#allocation1 + $0x18] sm:$0xff pattern:$0x75316420]
    %vm135 = vcmask 1043456
    %v136 = vsel %vm135, %v111, %v125
    %v137 = vsel %vm135, %v112, %v126
    %v138 = vsel %vm135, %v115, %v129
    %v139 = vsel %vm135, %v116, %v130
    %v140 = vld [vmem:[%s3] sm:$0xff]
    %s141 = scalar_lea.vmem %s3, 8
    %v142 = vld [vmem:[%s141] sm:$0xff]
    %v143 = vld [vmem:[%s4] sm:$0xff]
    %145 = vset.pattern.permute.xlu0 0
    %146 = vperm.xlu0 %145, %v140
    %v147 = vpop.permute.xlu0 %146
    %v149 = vmul.f32 %v136, %v147
    %v150 = vmul.f32 %v137, %v147
    %v151 = vmul.f32 %v138, %v147
    %v152 = vmul.f32 %v139, %v147
    %154 = vset.pattern.permute.xlu0 0
    %155 = vperm.xlu0 %154, %v142
    %v156 = vpop.permute.xlu0 %155
    %v158 = vadd.f32 %v149, %v156
    %v159 = vadd.f32 %v150, %v156
    %v160 = vadd.f32 %v151, %v156
    %v161 = vadd.f32 %v152, %v156
    %v162 = vmax.f32 %v158, 0.0
    %v163 = vmax.f32 %v159, 0.0
    %v164 = vmax.f32 %v160, 0.0
    %v165 = vmax.f32 %v161, 0.0
    %v166 = vld [vmem:[%s5] sm:$0xff]
    %168 = vset.pattern.permute.xlu0 0
    %169 = vperm.xlu0 %168, %v166
    %v170 = vpop.permute.xlu0 %169
    %vm172 = vcmask 64512
    %v174 = vsel %vm172, %v143, 0
    %176 = vmatpush.msra.mxu0 0.0
    %177 = vmatpush.msra.mxu0 0.0
    %178 = vmatpush.msra.mxu0 0.0
    %179 = vmatpush.msra.mxu0 0.0
    %180 = vmatpush.msra.mxu0 0.0
    %181 = vmatpush.msra.mxu0 0.0
    %182 = vmatpush.msra.mxu0 0.0
    %183 = vmatpush.msra.mxu0 0.0
    %184 = vmatpush.msra.mxu0 0.0
    %185 = vmatpush.msra.mxu0 0.0
    %186 = vmatpush.msra.mxu0 0.0
    %187 = vmatpush.msra.mxu0 0.0
    %188 = vmatpush.msra.mxu0 0.0
    %189 = vmatpush.msra.mxu0 0.0
    %190 = vmatpush.msra.mxu0 0.0
    %191 = vmatpush.msra.mxu0 %v162
    %192 = vmatmul.f32.gmra.mxu0 %v174
    %v193 = vpop.f32.mrf.mxu0
    %v194 = vadd.f32 %v170, %v193
    %195 = vdwg.mxu0
    %196 = vmatpush.msra.mxu0 0.0
    %197 = vmatpush.msra.mxu0 0.0
    %198 = vmatpush.msra.mxu0 0.0
    %199 = vmatpush.msra.mxu0 0.0
    %200 = vmatpush.msra.mxu0 0.0
    %201 = vmatpush.msra.mxu0 0.0
    %202 = vmatpush.msra.mxu0 0.0
    %203 = vmatpush.msra.mxu0 0.0
    %204 = vmatpush.msra.mxu0 0.0
    %205 = vmatpush.msra.mxu0 0.0
    %206 = vmatpush.msra.mxu0 0.0
    %207 = vmatpush.msra.mxu0 0.0
    %208 = vmatpush.msra.mxu0 0.0
    %209 = vmatpush.msra.mxu0 0.0
    %210 = vmatpush.msra.mxu0 0.0
    %211 = vmatpush.msra.mxu0 %v163
    %212 = vmatmul.f32.gmra.mxu0 %v174
    %v213 = vpop.f32.mrf.mxu0
    %v214 = vadd.f32 %v170, %v213
    %215 = vdwg.mxu0
    %216 = vst [vmem:[#allocation7] sm:$0xff] %v194
    %217 = vst [vmem:[#allocation7 + $0x8] sm:$0xff] %v214
    %218 = vmatpush.msra.mxu0 0.0
    %219 = vmatpush.msra.mxu0 0.0
    %220 = vmatpush.msra.mxu0 0.0
    %221 = vmatpush.msra.mxu0 0.0
    %222 = vmatpush.msra.mxu0 0.0
    %223 = vmatpush.msra.mxu0 0.0
    %224 = vmatpush.msra.mxu0 0.0
    %225 = vmatpush.msra.mxu0 0.0
    %226 = vmatpush.msra.mxu0 0.0
    %227 = vmatpush.msra.mxu0 0.0
    %228 = vmatpush.msra.mxu0 0.0
    %229 = vmatpush.msra.mxu0 0.0
    %230 = vmatpush.msra.mxu0 0.0
    %231 = vmatpush.msra.mxu0 0.0
    %232 = vmatpush.msra.mxu0 0.0
    %233 = vmatpush.msra.mxu0 %v164
    %234 = vmatmul.f32.gmra.mxu0 %v174
    %v235 = vpop.f32.mrf.mxu0
    %v236 = vadd.f32 %v170, %v235
    %237 = vdwg.mxu0
    %238 = vmatpush.msra.mxu0 0.0
    %239 = vmatpush.msra.mxu0 0.0
    %240 = vmatpush.msra.mxu0 0.0
    %241 = vmatpush.msra.mxu0 0.0
    %242 = vmatpush.msra.mxu0 0.0
    %243 = vmatpush.msra.mxu0 0.0
    %244 = vmatpush.msra.mxu0 0.0
    %245 = vmatpush.msra.mxu0 0.0
    %246 = vmatpush.msra.mxu0 0.0
    %247 = vmatpush.msra.mxu0 0.0
    %248 = vmatpush.msra.mxu0 0.0
    %249 = vmatpush.msra.mxu0 0.0
    %250 = vmatpush.msra.mxu0 0.0
    %251 = vmatpush.msra.mxu0 0.0
    %252 = vmatpush.msra.mxu0 0.0
    %253 = vmatpush.msra.mxu0 %v165
    %254 = vmatmul.f32.gmra.mxu0 %v174
    %v255 = vpop.f32.mrf.mxu0
    %v256 = vadd.f32 %v170, %v255
    %257 = vdwg.mxu0
    %s258 = scalar_lea.vmem [#allocation7], 16
    %259 = vst [vmem:[%s258] sm:$0xff] %v236
    %260 = vst [vmem:[%s258 + $0x8] sm:$0xff] %v256
    // Predicated region
    $region34: #{tpu_custom_call.1} parent=1 // pred_check
      _
    $region35: #{tpu_custom_call.1} parent=1 // pred_check_branch
      %262 = sbr.rel (0) target = $region37
    $region36: #{tpu_custom_call.1} parent=1 // pred_region
      %264 = vsyncadd [#allocation4], 0
      %s265 = sshll.u32 [#allocation7], 4
      %s266 = int_to_ptr.vmem [resolvable:$true] %s265
      %s267 = sshll.u32 %s6, 4
      %s268 = int_to_ptr.hbm [resolvable:$true] %s267
      %273 = dma.vmem_to_hbm [thread:$0]  %s266, 512, %s268, [#allocation4], 256, 256, 16
    $region37: #{tpu_custom_call.1} parent=1 // pred_fallthru
      _
    // Predicated region
    $region38: #{tpu_custom_call.1} parent=1 // pred_check
      _
    $region39: #{tpu_custom_call.1} parent=1 // pred_check_branch
      %275 = sbr.rel (0) target = $region41
    $region40: #{tpu_custom_call.1} parent=1 // pred_region
      %277 = dma.done [#allocation4], 512
    $region41: #{tpu_custom_call.1} parent=1 // pred_fallthru
      _
    %278 = vsyncpa [#allocation3], 1
    %279 = vsyncpa [#allocation6], 1
    %280 = vsyncpa [#allocation4], 1

</llo_original>
